<compile_context>
chip_gen: v6e
topology: v6e:2x2x1
jax: 0.10.0
libtpu: 0.0.40
codegen_flags: <defaults>
</compile_context>

<pallas_src>
import functools

import jax
import jax.numpy as jnp
from jax.experimental import pallas as pl
from jax.experimental.pallas import tpu as pltpu

_MIB = 1024 * 1024


def _distill_kl_kernel(ys_ref, yt_ref, out_ref, acc_ref, *,
                       inv_T, scale, B, block_batch, batch_axis, needs_mask):
    i = pl.program_id(1)            # inner (sequential) step for this core
    cls_axis = 1 - batch_axis

    @pl.when(i == 0)
    def _():
        acc_ref[...] = jnp.zeros_like(acc_ref)

    # Upcast only after the tile is in VMEM; multiply by 1/T instead of divide.
    ys = ys_ref[...].astype(jnp.float32) * inv_T
    yt = yt_ref[...].astype(jnp.float32) * inv_T

    max_s = jnp.max(ys, axis=cls_axis, keepdims=True)
    max_t = jnp.max(yt, axis=cls_axis, keepdims=True)

    # Student log-partition: one full-tile exp.
    log_z_s = jnp.log(jnp.sum(jnp.exp(ys - max_s), axis=cls_axis, keepdims=True))

    # Teacher: one full-tile exp, reused for partition and expectation.
    d = yt - ys
    exp_yt = jnp.exp(yt - max_t)
    sum_t = jnp.sum(exp_yt, axis=cls_axis, keepdims=True)
    log_z_t = jnp.log(sum_t)

    # Per-row KL(p_t || p_s) without materializing p_t / log_p_*:
    #   sum_c p_t*(log p_t - log p_s)
    # = [sum_c exp_yt*(yt-ys) - (max_t-max_s)*sum_t] / sum_t - (logZ_t - logZ_s)
    s_row = jnp.sum(exp_yt * d, axis=cls_axis, keepdims=True) - (max_t - max_s) * sum_t
    row_kl = s_row / sum_t - (log_z_t - log_z_s)

    if needs_mask:
        # Single narrow select; garbage/NaN from OOB-padded rows is discarded.
        start = (pl.program_id(0) * pl.num_programs(1) + i) * block_batch
        idx = jax.lax.broadcasted_iota(jnp.int32, row_kl.shape, batch_axis) + start
        row_kl = jnp.where(idx < B, row_kl, 0.0)

    # Cheap vector accumulate each step; no per-step XLU reduce / scalar store.
    acc_ref[...] += row_kl

    @pl.when(i == pl.num_programs(1) - 1)
    def _():
        out_ref[...] = (jnp.sum(acc_ref[...]) * scale).reshape(1, 1, 1)


def _tpu_vmem_capacity_bytes() -> int:
    try:
        return int(pltpu.get_tpu_info().vmem_capacity_bytes)
    except Exception:
        return 64 * _MIB            # conservative default (v7x per-TC)


def _num_tensorcores() -> int:
    # Best-effort; 1 is always correct (v5e/v6e have a single TC per chip).
    try:
        info = pltpu.get_tpu_info()
        for name in ("num_cores", "core_count", "num_tensorcores", "tensor_cores"):
            v = getattr(info, name, None)
            if isinstance(v, int) and 1 <= v <= 8:
                return v
    except Exception:
        pass
    try:
        v = getattr(jax.devices()[0], "num_cores", None)
        if isinstance(v, int) and 1 <= v <= 8:
            return v
    except Exception:
        pass
    return 1


def _align_block(tb: int, total: int, mult: int) -> int:
    tb = int(tb)
    if tb >= total:
        return total                 # full-extent block is always layout-legal
    tb = max(mult, (tb // mult) * mult)
    return total if tb >= total else tb


def _choose_block_batch(B, C, itemsize, batch_axis, budget_bytes, mult):
    # Per-batch-element VMEM footprint while the pipeline is full:
    #   2 inputs x 2 pipeline buffers x C x itemsize   (BlockSpec double-buffer)
    # + ~3 full-tile f32 temporaries x C x 4           (d, exp_yt, shifted logits)
    # + padded accumulator slice ((rows,1) -> 128 lanes, (1,cols) -> 8 sublanes)
    acc_pad = 512 if batch_axis == 0 else 32
    per_elem = 4 * C * itemsize + 3 * C * 4 + acc_pad
    tb = max(1, budget_bytes // per_elem)
    return _align_block(tb, B, mult)


def distill_kl(y_s: jax.Array, y_t: jax.Array, T: float, *, tile_rows=None) -> jax.Array:
    """Pallas implementation of DistillKL.forward. y_s, y_t: (B, C) logits."""
    assert y_s.shape == y_t.shape and y_s.ndim == 2
    B, C = y_s.shape
    itemsize = jnp.dtype(y_s.dtype).itemsize

    # Small class count -> put the batch on the 128-lane axis instead of C.
    batch_axis = 1 if C <= 64 else 0
    if batch_axis == 1:
        ys_in, yt_in = y_s.T, y_t.T                       # (C, B)
        mult = 128                                        # lane-dim alignment
    else:
        ys_in, yt_in = y_s, y_t                           # (B, C)
        mult = {4: 8, 2: 16, 1: 32}.get(itemsize, 8)      # sublane packing

    vmem = _tpu_vmem_capacity_bytes()
    vmem_limit = int(min(vmem // 2, 64 * _MIB))           # 64 MiB v5e/v6e, 32 MiB v7x
    budget = vmem // 4                                    # in-flight footprint target

    if tile_rows is not None:
        TB = _align_block(int(tile_rows), B, mult)        # re-align user-given tile
    else:
        TB = _choose_block_batch(B, C, itemsize, batch_axis, budget, mult)

    n_blocks = pl.cdiv(B, TB)
    nc = max(1, min(_num_tensorcores(), n_blocks))
    steps_per_core = pl.cdiv(n_blocks, nc)
    needs_mask = (nc * steps_per_core * TB) != B
    scale = float(T) * float(T) / float(B)

    kernel = functools.partial(
        _distill_kl_kernel,
        inv_T=1.0 / float(T), scale=scale, B=B,
        block_batch=TB, batch_axis=batch_axis, needs_mask=needs_mask)

    spc = steps_per_core
    if batch_axis == 0:
        in_spec = pl.BlockSpec((TB, C), lambda c, i: (c * spc + i, 0))
        acc_shape = (TB, 1)
    else:
        in_spec = pl.BlockSpec((C, TB), lambda c, i: (0, c * spc + i))
        acc_shape = (1, TB)

    bytes_in = 2 * B * C * itemsize
    cost = pl.CostEstimate(flops=10 * B * C, transcendentals=2 * B * C,
                           bytes_accessed=bytes_in + 4 * nc)

    partials = pl.pallas_call(
        kernel,
        out_shape=jax.ShapeDtypeStruct((nc, 1, 1), jnp.float32),
        grid=(nc, steps_per_core),
        in_specs=[in_spec, in_spec],
        out_specs=pl.BlockSpec((1, 1, 1), lambda c, i: (c, 0, 0)),
        scratch_shapes=[pltpu.VMEM(acc_shape, jnp.float32)],
        compiler_params=pltpu.CompilerParams(
            dimension_semantics=("parallel", "arbitrary"),
            vmem_limit_bytes=vmem_limit),
        cost_estimate=cost,
    )(ys_in, yt_in)
    return jnp.sum(partials)


def _distill_kl_ref(y_s, y_t, T):
    # Pure-JAX reference for verification.
    log_p_s = jax.nn.log_softmax(y_s.astype(jnp.float32) / T, axis=1)
    log_p_t = jax.nn.log_softmax(y_t.astype(jnp.float32) / T, axis=1)
    p_t = jnp.exp(log_p_t)
    return jnp.sum(p_t * (log_p_t - log_p_s)) * (T * T) / y_s.shape[0]


if __name__ == "__main__":
    T = 4.0
    key = jax.random.PRNGKey(0)
    k1, k2, k3, k4, k5, k6 = jax.random.split(key, 6)

    # Test 1: small class count -> batch-on-lanes (transposed) layout, 1 tile.
    y_s = jax.random.normal(k1, (8, 32), dtype=jnp.float32)
    y_t = jax.random.normal(k2, (8, 32), dtype=jnp.float32)
    out = jax.block_until_ready(distill_kl(y_s, y_t, T))
    ref = jax.block_until_ready(_distill_kl_ref(y_s, y_t, T))
    assert jnp.allclose(out, ref, rtol=1e-4, atol=1e-5), (out, ref)

    # Test 2: larger class count -> classes-on-lanes layout, multi-step grid
    # with a ragged last tile (exercises accumulation + the (rows,1) select).
    y_s2 = jax.random.normal(k3, (12, 160), dtype=jnp.float32)
    y_t2 = jax.random.normal(k4, (12, 160), dtype=jnp.float32)
    out2 = jax.block_until_ready(distill_kl(y_s2, y_t2, T, tile_rows=8))
    ref2 = jax.block_until_ready(_distill_kl_ref(y_s2, y_t2, T))
    assert jnp.allclose(out2, ref2, rtol=1e-4, atol=1e-5), (out2, ref2)

    # Test 3: bf16 logits, transposed layout with a ragged lane tile.
    y_s3 = jax.random.normal(k5, (300, 40), dtype=jnp.bfloat16)
    y_t3 = jax.random.normal(k6, (300, 40), dtype=jnp.bfloat16)
    out3 = jax.block_until_ready(distill_kl(y_s3, y_t3, T, tile_rows=128))
    ref3 = jax.block_until_ready(_distill_kl_ref(y_s3, y_t3, T))
    assert jnp.allclose(out3, ref3, rtol=1e-3, atol=1e-3), (out3, ref3)

    print("KERNEL_OK")
</pallas_src>

<mosaic_0001>
module attributes {stable_mosaic.version = 11 : i64} {
  func.func @_distill_kl_kernel(%arg0: i32, %arg1: i32, %arg2: memref<32x8xf32, #tpu.memory_space<vmem>>, %arg3: memref<32x8xf32, #tpu.memory_space<vmem>>, %arg4: memref<1x1x1xf32, #tpu.memory_space<vmem>>, %arg5: memref<1x8xf32, #tpu.memory_space<vmem>>) attributes {dimension_semantics = [#tpu.dimension_semantics<parallel>, #tpu.dimension_semantics<arbitrary>], iteration_bounds = array<i64: 1, 1>, scalar_prefetch = 0 : i64, scratch_operands = 1 : i64, tpu.core_type = #tpu.core_type<tc>, window_params = [{transform_indices = @transform_0, window_bounds = array<i64: 32, 8>}, {transform_indices = @transform_1, window_bounds = array<i64: 32, 8>}, {transform_indices = @transform_2, window_bounds = array<i64: 1, 1, 1>}]} {
    %c0_i32 = arith.constant 0 : i32
    %0 = arith.cmpi eq, %arg1, %c0_i32 : i32
    %1 = arith.extui %0 : i1 to i32
    %c0_i32_0 = arith.constant 0 : i32
    %2 = arith.cmpi ne, %1, %c0_i32_0 : i32
    scf.if %2 {
      %cst_16 = arith.constant 0.000000e+00 : f32
      %41 = vector.broadcast %cst_16 : f32 to vector<1x8xf32>
      %c0_17 = arith.constant 0 : index
      %c0_18 = arith.constant 0 : index
      %42 = vector.load %arg5[%c0_17, %c0_18] : memref<1x8xf32, #tpu.memory_space<vmem>>, vector<1x8xf32>
      tpu.vector_store %arg5[%c0_17, %c0_18], %41 {strides = array<i32>} : memref<1x8xf32, #tpu.memory_space<vmem>>, vector<1x8xf32>,
    } else {
    }
    %c0 = arith.constant 0 : index
    %c0_1 = arith.constant 0 : index
    %3 = vector.load %arg2[%c0, %c0_1] : memref<32x8xf32, #tpu.memory_space<vmem>>, vector<32x8xf32>
    %cst = arith.constant 2.500000e-01 : f32
    %4 = vector.broadcast %cst : f32 to vector<32x8xf32>
    %5 = arith.mulf %3, %4 : vector<32x8xf32>
    %c0_2 = arith.constant 0 : index
    %c0_3 = arith.constant 0 : index
    %6 = vector.load %arg3[%c0_2, %c0_3] : memref<32x8xf32, #tpu.memory_space<vmem>>, vector<32x8xf32>
    %cst_4 = arith.constant 2.500000e-01 : f32
    %7 = vector.broadcast %cst_4 : f32 to vector<32x8xf32>
    %8 = arith.mulf %6, %7 : vector<32x8xf32>
    %cst_5 = arith.constant dense<0xFF800000> : vector<8xf32>
    %9 = vector.multi_reduction <maximumf>, %5, %cst_5 [0] : vector<32x8xf32> to vector<8xf32>
    %10 = vector.shape_cast %9 : vector<8xf32> to vector<1x8xf32>
    %cst_6 = arith.constant dense<0xFF800000> : vector<8xf32>
    %11 = vector.multi_reduction <maximumf>, %8, %cst_6 [0] : vector<32x8xf32> to vector<8xf32>
    %12 = vector.shape_cast %11 : vector<8xf32> to vector<1x8xf32>
    %13 = vector.broadcast %10 : vector<1x8xf32> to vector<32x8xf32>
    %14 = arith.subf %5, %13 : vector<32x8xf32>
    %15 = math.exp %14 : vector<32x8xf32>
    %cst_7 = arith.constant dense<0.000000e+00> : vector<8xf32>
    %16 = vector.multi_reduction <add>, %15, %cst_7 [0] : vector<32x8xf32> to vector<8xf32>
    %17 = vector.shape_cast %16 : vector<8xf32> to vector<1x8xf32>
    %18 = math.log %17 : vector<1x8xf32>
    %19 = arith.subf %8, %5 : vector<32x8xf32>
    %20 = vector.broadcast %12 : vector<1x8xf32> to vector<32x8xf32>
    %21 = arith.subf %8, %20 : vector<32x8xf32>
    %22 = math.exp %21 : vector<32x8xf32>
    %cst_8 = arith.constant dense<0.000000e+00> : vector<8xf32>
    %23 = vector.multi_reduction <add>, %22, %cst_8 [0] : vector<32x8xf32> to vector<8xf32>
    %24 = vector.shape_cast %23 : vector<8xf32> to vector<1x8xf32>
    %25 = math.log %24 : vector<1x8xf32>
    %26 = arith.mulf %22, %19 : vector<32x8xf32>
    %cst_9 = arith.constant dense<0.000000e+00> : vector<8xf32>
    %27 = vector.multi_reduction <add>, %26, %cst_9 [0] : vector<32x8xf32> to vector<8xf32>
    %28 = vector.shape_cast %27 : vector<8xf32> to vector<1x8xf32>
    %29 = arith.subf %12, %10 : vector<1x8xf32>
    %30 = arith.mulf %29, %24 : vector<1x8xf32>
    %31 = arith.subf %28, %30 : vector<1x8xf32>
    %32 = arith.divf %31, %24 : vector<1x8xf32>
    %33 = arith.subf %25, %18 : vector<1x8xf32>
    %34 = arith.subf %32, %33 : vector<1x8xf32>
    %c0_10 = arith.constant 0 : index
    %c0_11 = arith.constant 0 : index
    %35 = vector.load %arg5[%c0_10, %c0_11] : memref<1x8xf32, #tpu.memory_space<vmem>>, vector<1x8xf32>
    %36 = arith.addf %35, %34 : vector<1x8xf32>
    %c0_12 = arith.constant 0 : index
    %c0_13 = arith.constant 0 : index
    %37 = vector.load %arg5[%c0_12, %c0_13] : memref<1x8xf32, #tpu.memory_space<vmem>>, vector<1x8xf32>
    tpu.vector_store %arg5[%c0_12, %c0_13], %36 {strides = array<i32>} : memref<1x8xf32, #tpu.memory_space<vmem>>, vector<1x8xf32>,
    %c0_i32_14 = arith.constant 0 : i32
    %38 = arith.cmpi eq, %arg1, %c0_i32_14 : i32
    %39 = arith.extui %38 : i1 to i32
    %c0_i32_15 = arith.constant 0 : i32
    %40 = arith.cmpi ne, %39, %c0_i32_15 : i32
    scf.if %40 {
      %c0_16 = arith.constant 0 : index
      %c0_17 = arith.constant 0 : index
      %41 = vector.load %arg5[%c0_16, %c0_17] : memref<1x8xf32, #tpu.memory_space<vmem>>, vector<1x8xf32>
      %42 = vector.shape_cast %41 : vector<1x8xf32> to vector<1x1x8xf32>
      %cst_18 = arith.constant dense<0.000000e+00> : vector<1xf32>
      %43 = vector.multi_reduction <add>, %42, %cst_18 [1, 2] : vector<1x1x8xf32> to vector<1xf32>
      %44 = vector.shape_cast %43 : vector<1xf32> to vector<1x1x1xf32>
      %45 = vector.extract %44[0, 0, 0] : f32 from vector<1x1x1xf32>
      %cst_19 = arith.constant 2.000000e+00 : f32
      %46 = arith.mulf %45, %cst_19 : f32
      %47 = vector.broadcast %46 : f32 to vector<1x1x1xf32>
      %c0_20 = arith.constant 0 : index
      %c0_21 = arith.constant 0 : index
      %c0_22 = arith.constant 0 : index
      %48 = vector.load %arg4[%c0_20, %c0_21, %c0_22] : memref<1x1x1xf32, #tpu.memory_space<vmem>>, vector<1x1x1xf32>
      tpu.vector_store %arg4[%c0_20, %c0_21, %c0_22], %47 {strides = array<i32>} : memref<1x1x1xf32, #tpu.memory_space<vmem>>, vector<1x1x1xf32>,
    } else {
    }
    return
  }
  func.func @transform_0(%arg0: i32, %arg1: i32) -> (i32, i32) {
    %c1_i32 = arith.constant 1 : i32
    %0 = arith.muli %arg0, %c1_i32 : i32
    %1 = arith.addi %0, %arg1 : i32
    %c0_i32 = arith.constant 0 : i32
    %c0_i32_0 = arith.constant 0 : i32
    return %c0_i32, %1 : i32, i32
  }
  func.func @transform_1(%arg0: i32, %arg1: i32) -> (i32, i32) {
    %c1_i32 = arith.constant 1 : i32
    %0 = arith.muli %arg0, %c1_i32 : i32
    %1 = arith.addi %0, %arg1 : i32
    %c0_i32 = arith.constant 0 : i32
    %c0_i32_0 = arith.constant 0 : i32
    return %c0_i32, %1 : i32, i32
  }
  func.func @transform_2(%arg0: i32, %arg1: i32) -> (i32, i32, i32) {
    %c0_i32 = arith.constant 0 : i32
    %c0_i32_0 = arith.constant 0 : i32
    %c0_i32_1 = arith.constant 0 : i32
    return %arg0, %c0_i32, %c0_i32_0 : i32, i32, i32
  }
}

</mosaic_0001>

<llo_original>
// kernel: tpu_custom_call.1
$region0: #{tpu_custom_call.1}
  #allocation0 [shape = 'u32[]', space=smem, size = 0x4, offset = 0x4, fixed_abs, tag = 'smem constant byte address 0x4 - core index']
  #allocation1 [shape = 'u32[144,128]{1,0:T(1,128)}', space=vmem, size = 0x12000, scoped, tag = 'internal scratch']
  #allocation2 [shape = 'f32[1,8]{1,0:T(1,128)}', space=vmem, size = 0x200, scoped, tag = 'scratch operand']
  %s0 = inlined_call_operand.vmem [shape: f32[32,8], index: 0, kind: input, shape index: {}]
  %s1 = inlined_call_operand.vmem [shape: f32[32,8], index: 1, kind: input, shape index: {}]
  %s2 = inlined_call_operand.hbm [shape: f32[1,1,1], index: 2, kind: output, shape index: {}]
  %s3 = sld [smem:[#allocation0]]
  $region26: #{tpu_custom_call.1} parent=0
    _
  %s5 = ssub.s32 1, %s3
  %s6 = scalar_select 0, %s5, %s3
  $region1: #{tpu_custom_call.1} parent=0
    #allocation3 [shape = 'u8[512]{0}', space=vmem, size = 0x400, scoped, tag = 'output window, operand 0, single buffered']
    #allocation4 [shape = 's32[1]{0}', space=sflag, size = 0x4, scoped, tag = 'scoped memory for tpu_custom_call.1']
    %7 = vsyncpa [#allocation4], 0
    // Predicated region
    $region2: #{tpu_custom_call.1} parent=1 // pred_check
      _
    $region3: #{tpu_custom_call.1} parent=1 // pred_check_branch
      %9 = sbr.rel (0) target = $region5
    $region4: #{tpu_custom_call.1} parent=1 // pred_region
      %s10 = sadd.s32 0, 0
      %p11 = scmp.lt.s32.totalorder %s10, 0
      %s12 = scalar_select %p11, %s10, 0
      %s13 = smul.addr %s12, 8
      %s14 = scalar_lea.vmem %s0, %s13
      %s15 = sadd.s32 0, 0
    $region5: #{tpu_custom_call.1} parent=1 // pred_fallthru
      _
    // Predicated region
    $region6: #{tpu_custom_call.1} parent=1 // pred_check
      _
    $region7: #{tpu_custom_call.1} parent=1 // pred_check_branch
      %17 = sbr.rel (0) target = $region9
    $region8: #{tpu_custom_call.1} parent=1 // pred_region
      %s18 = sadd.s32 0, 0
      %p19 = scmp.lt.s32.totalorder %s18, 0
      %s20 = scalar_select %p19, %s18, 0
      %s21 = smul.addr %s20, 8
      %s22 = scalar_lea.vmem %s1, %s21
      %s23 = sadd.s32 0, 0
    $region9: #{tpu_custom_call.1} parent=1 // pred_fallthru
      _
    %s24 = sadd.s32 0, 0
    %p25 = scmp.lt.s32.totalorder %s24, 0
    %s26 = scalar_select %p25, %s24, 0
    %s27 = smul.addr %s26, 8
    %s28 = scalar_lea.vmem %s0, %s27
    %s29 = sadd.s32 0, 0
    %p30 = scmp.lt.s32.totalorder %s29, 0
    %s31 = scalar_select %p30, %s29, 0
    %s32 = smul.addr %s31, 8
    %s33 = scalar_lea.vmem %s1, %s32
    %s34 = sadd.s32 0, 0
    %p35 = scmp.lt.s32.totalorder %s34, 0
    %s36 = scalar_select %p35, %s34, 0
    %s37 = smul.addr %s36, 8
    %s38 = scalar_lea.vmem %s0, %s37
    %s39 = sadd.s32 0, 0
    %s40 = sadd.s32 0, 0
    %p41 = scmp.lt.s32.totalorder %s40, 0
    %s42 = scalar_select %p41, %s40, 0
    %s43 = smul.addr %s42, 8
    %s44 = scalar_lea.vmem %s1, %s43
    %s45 = sadd.s32 0, 0
    %p46 = scmp.eq.s32.totalorder 0, 0
    // Predicated region
    $region10: #{tpu_custom_call.1} parent=1 // pred_check
      %p47 = pneg %p46
    $region11: #{tpu_custom_call.1} parent=1 // pred_check_branch
      %49 = sbr.rel (%p47) target = $region13
    $region12: #{tpu_custom_call.1} parent=1 // pred_region
      %vm50 = vcmask 57344
      %51 = vst.msk [vmem:[#allocation2] sm:$0x1] %vm50, 0.0
    $region13: #{tpu_custom_call.1} parent=1 // pred_fallthru
      _
    %v52 = vld [vmem:[%s38] sm:$0xff]
    %v53 = vld [vmem:[%s38 + $0x8] sm:$0xff]
    %v54 = vld [vmem:[%s38 + $0x10] sm:$0xff]
    %v55 = vld [vmem:[%s38 + $0x18] sm:$0xff]
    %v56 = vmul.f32 %v52, 0.25
    %v57 = vmul.f32 %v53, 0.25
    %v58 = vmul.f32 %v54, 0.25
    %v59 = vmul.f32 %v55, 0.25
    %v60 = vld [vmem:[%s44] sm:$0xff]
    %v61 = vld [vmem:[%s44 + $0x8] sm:$0xff]
    %v62 = vld [vmem:[%s44 + $0x10] sm:$0xff]
    %v63 = vld [vmem:[%s44 + $0x18] sm:$0xff]
    %v64 = vmul.f32 %v60, 0.25
    %v65 = vmul.f32 %v61, 0.25
    %v66 = vmul.f32 %v62, 0.25
    %v67 = vmul.f32 %v63, 0.25
    %vm68 = vcmask 64512
    %v69 = vsel %vm68, %v56, -inf
    %v70 = vsel %vm68, %v57, -inf
    %v71 = vsel %vm68, %v58, -inf
    %v72 = vsel %vm68, %v59, -inf
    %v73 = vmax.f32 %v69, %v70
    %v74 = vmax.f32 %v71, %v72
    %v75 = vmax.f32 %v73, %v74
    %v76 = vrot.slane %v75, 4
    %v77 = vmax.f32 %v75, %v76
    %v78 = vrot.slane %v77, 2
    %v79 = vmax.f32 %v77, %v78
    %v80 = vrot.slane %v79, 1
    %v81 = vmax.f32 %v79, %v80
    %v82 = vsel %vm68, %v64, -inf
    %v83 = vsel %vm68, %v65, -inf
    %v84 = vsel %vm68, %v66, -inf
    %v85 = vsel %vm68, %v67, -inf
    %v86 = vmax.f32 %v82, %v83
    %v87 = vmax.f32 %v84, %v85
    %v88 = vmax.f32 %v86, %v87
    %v89 = vrot.slane %v88, 4
    %v90 = vmax.f32 %v88, %v89
    %v91 = vrot.slane %v90, 2
    %v92 = vmax.f32 %v90, %v91
    %v93 = vrot.slane %v92, 1
    %v94 = vmax.f32 %v92, %v93
    %v95 = vsub.f32 %v56, %v81
    %v96 = vsub.f32 %v57, %v81
    %v97 = vsub.f32 %v58, %v81
    %v98 = vsub.f32 %v59, %v81
    %v99 = vmul.f32 %v95, 1.442695
    %v100 = vpow.pop %v99
    %v101 = vmul.f32 %v96, 1.442695
    %v102 = vpow.pop %v101
    %v103 = vmul.f32 %v97, 1.442695
    %v104 = vpow.pop %v103
    %v105 = vmul.f32 %v98, 1.442695
    %v106 = vpow.pop %v105
    %v107 = vsel %vm68, %v100, 0.0
    %v108 = vsel %vm68, %v102, 0.0
    %v109 = vadd.f32 %v107, %v108
    %v110 = vsel %vm68, %v104, 0.0
    %v111 = vadd.f32 %v109, %v110
    %v112 = vsel %vm68, %v106, 0.0
    %v113 = vadd.f32 %v111, %v112
    %v114 = vrot.slane %v113, 4
    %v115 = vadd.f32 %v113, %v114
    %v116 = vrot.slane %v115, 2
    %v117 = vadd.f32 %v115, %v116
    %v118 = vrot.slane %v117, 1
    %v119 = vadd.f32 %v117, %v118
    %v120 = vlog2.pop %v119
    %v121 = vmul.f32 %v120, 0.6931472
    %v122 = vsub.f32 %v64, %v56
    %v123 = vsub.f32 %v65, %v57
    %v124 = vsub.f32 %v66, %v58
    %v125 = vsub.f32 %v67, %v59
    %v126 = vsub.f32 %v64, %v94
    %v127 = vsub.f32 %v65, %v94
    %v128 = vsub.f32 %v66, %v94
    %v129 = vsub.f32 %v67, %v94
    %v130 = vmul.f32 %v126, 1.442695
    %v131 = vpow.pop %v130
    %v132 = vmul.f32 %v127, 1.442695
    %v133 = vpow.pop %v132
    %v134 = vmul.f32 %v128, 1.442695
    %v135 = vpow.pop %v134
    %v136 = vmul.f32 %v129, 1.442695
    %v137 = vpow.pop %v136
    %v138 = vsel %vm68, %v131, 0.0
    %v139 = vsel %vm68, %v133, 0.0
    %v140 = vadd.f32 %v138, %v139
    %v141 = vsel %vm68, %v135, 0.0
    %v142 = vadd.f32 %v140, %v141
    %v143 = vsel %vm68, %v137, 0.0
    %v144 = vadd.f32 %v142, %v143
    %v145 = vrot.slane %v144, 4
    %v146 = vadd.f32 %v144, %v145
    %v147 = vrot.slane %v146, 2
    %v148 = vadd.f32 %v146, %v147
    %v149 = vrot.slane %v148, 1
    %v150 = vadd.f32 %v148, %v149
    %v151 = vlog2.pop %v150
    %v152 = vmul.f32 %v151, 0.6931472
    %v153 = vmul.f32 %v131, %v122
    %v154 = vmul.f32 %v133, %v123
    %v155 = vmul.f32 %v135, %v124
    %v156 = vmul.f32 %v137, %v125
    %v157 = vsel %vm68, %v153, 0.0
    %v158 = vsel %vm68, %v154, 0.0
    %v159 = vadd.f32 %v157, %v158
    %v160 = vsel %vm68, %v155, 0.0
    %v161 = vadd.f32 %v159, %v160
    %v162 = vsel %vm68, %v156, 0.0
    %v163 = vadd.f32 %v161, %v162
    %v164 = vrot.slane %v163, 4
    %v165 = vadd.f32 %v163, %v164
    %v166 = vrot.slane %v165, 2
    %v167 = vadd.f32 %v165, %v166
    %v168 = vrot.slane %v167, 1
    %v169 = vadd.f32 %v167, %v168
    %v170 = vsub.f32 %v94, %v81
    %v171 = vmul.f32 %v170, %v150
    %v172 = vsub.f32 %v169, %v171
    %v173 = vrcp.pop %v150
    %v174 = vmul.f32 %v172, %v173
    %v175 = vsub.f32 %v152, %v121
    %v176 = vsub.f32 %v174, %v175
    %v177 = vld [vmem:[#allocation2] sm:$0x1]
    %v178 = vadd.f32 %v177, %v176
    %vm179 = vcmask 57344
    %180 = vst.msk [vmem:[#allocation2] sm:$0x1] %vm179, %v178
    // Predicated region
    $region14: #{tpu_custom_call.1} parent=1 // pred_check
      %p181 = pneg %p46
    $region15: #{tpu_custom_call.1} parent=1 // pred_check_branch
      %183 = sbr.rel (%p181) target = $region17
    $region16: #{tpu_custom_call.1} parent=1 // pred_region
      %v184 = vld [vmem:[#allocation2] sm:$0x1]
      %v185 = vsel %vm179, %v184, 0.0
      %186 = vadd.xlane.f32.xlu0 %v185
      %v187 = vpop.xlane.xlu0 %186
      %v188 = vrot.slane %v187, 4
      %v189 = vadd.f32 %v187, %v188
      %v190 = vrot.slane %v189, 2
      %v191 = vadd.f32 %v189, %v190
      %v192 = vrot.slane %v191, 1
      %v193 = vadd.f32 %v191, %v192
      %s194 = vtos %v193
      %s195 = smul.f32 %s194, 2.0
      %v196 = vstv %s195
      %vm197 = vcmask 0
      %198 = vst.msk [vmem:[#allocation3] sm:$0x1] %vm197, %v196
    $region17: #{tpu_custom_call.1} parent=1 // pred_fallthru
      _
    // Predicated region
    $region18: #{tpu_custom_call.1} parent=1 // pred_check
      _
    $region19: #{tpu_custom_call.1} parent=1 // pred_check_branch
      %200 = sbr.rel (0) target = $region21
    $region20: #{tpu_custom_call.1} parent=1 // pred_region
      %s202 = ssub.s32 16, 16
      %203 = vsyncadd [#allocation4], %s202
      %s205 = sshll.u32 [#allocation3], 4
      %s206 = int_to_ptr.vmem [resolvable:$true] %s205
      %208 = dma.vmem_to_hbm [thread:$0]  %s206, 16, %s2, [#allocation4]
    $region21: #{tpu_custom_call.1} parent=1 // pred_fallthru
      _
    // Predicated region
    $region22: #{tpu_custom_call.1} parent=1 // pred_check
      _
    $region23: #{tpu_custom_call.1} parent=1 // pred_check_branch
      %210 = sbr.rel (0) target = $region25
    $region24: #{tpu_custom_call.1} parent=1 // pred_region
      %211 = dma.done [#allocation4], 16
    $region25: #{tpu_custom_call.1} parent=1 // pred_fallthru
      _
    %212 = vsyncpa [#allocation4], 1

</llo_original>
